<compile_context>
chip_gen: v5e
topology: v5e:2x2
jax: 0.10.0
libtpu: 0.0.40
codegen_flags: <defaults>
</compile_context>

<pallas_src>
import jax
import jax.numpy as jnp
from jax.experimental import pallas as pl
from jax.experimental.pallas import tpu as pltpu


def ffnn_kernel(x_ref, w1_ref, w2_ref, w3t_ref, o_ref):
    # x_ref:  (2, tm)   -- batch on the lane axis
    # w1_ref: (32, 2), w2_ref: (16, 32), w3t_ref: (16, 1)
    # o_ref:  (1, tm)
    x = x_ref[...]
    w1 = w1_ref[...]

    # Layer 1 (contraction dim = 2): broadcast-FMA on the VPU.
    pre1 = w1[:, 0:1] * x[0:1, :] + w1[:, 1:2] * x[1:2, :]          # (32, tm)
    h1 = jnp.tanh(pre1)

    # Layer 2 (32 -> 16) on the MXU; batch stays lane-dense.
    h2 = jnp.tanh(jnp.dot(w2_ref[...], h1,
                          preferred_element_type=jnp.float32))      # (16, tm)

    # Layer 3 (M=1): VPU multiply + cross-sublane (XLU) reduce instead of a
    # 1/128-dense MXU matmul -> no MRF pop / extra result store (helps v5e).
    out = jnp.sum(w3t_ref[...] * h2, axis=0, keepdims=True)         # (1, tm)
    o_ref[...] = out.astype(o_ref.dtype)


def _round_up(n, m):
    return ((n + m - 1) // m) * m


def ffnn_forward_cb(x_cb, w1, w2, w3, *, tm=8192):
    """Core entry point.

    x_cb: (2, B) float32 -- batch already on the trailing (lane) axis.
    w1: (32, 2), w2: (16, 32), w3: (1, 16)   (PyTorch [out, in] layout)
    Returns (1, B) float32.
    """
    Din, B = x_cb.shape
    assert Din == 2

    # Tile selection: lane-aligned (multiple of 128), capped at `tm`, and small
    # enough that the grid has >= 2 steps when B > 128 (v7x megacore sharding).
    tm = _round_up(max(128, int(tm)), 128)
    two_step_tile = max(128, _round_up(pl.cdiv(B, 2), 128))
    tm = min(tm, two_step_tile)
    grid = (pl.cdiv(B, tm),)

    # w3 as (16, 1): reshape of a (1, 16) array is a pure bitcast (same order).
    w3t = w3.reshape(16, 1)

    out = pl.pallas_call(
        ffnn_kernel,
        out_shape=jax.ShapeDtypeStruct((1, B), jnp.float32),
        grid_spec=pltpu.PrefetchScalarGridSpec(
            num_scalar_prefetch=0,
            grid=grid,
            in_specs=[
                pl.BlockSpec((2, tm), lambda i: (0, i)),    # x tile over batch (lanes)
                pl.BlockSpec((32, 2), lambda i: (0, 0)),    # w1, resident
                pl.BlockSpec((16, 32), lambda i: (0, 0)),   # w2, resident
                pl.BlockSpec((16, 1), lambda i: (0, 0)),    # w3^T, resident
            ],
            out_specs=pl.BlockSpec((1, tm), lambda i: (0, i)),  # lane-dense output
        ),
        compiler_params=pltpu.CompilerParams(
            dimension_semantics=("parallel",)),
    )(x_cb, w1, w2, w3t)
    return out


def ffnn_forward(x, w1, w2, w3, *, tm=8192):
    """PyTorch-compatible wrapper: x [B, 2] -> [B, 1].

    Prefer ffnn_forward_cb with x already in (2, B) layout to avoid the
    transpose; the output reshape below is a bitcast, not a transpose op.
    """
    B, Din = x.shape
    assert Din == 2
    out = ffnn_forward_cb(x.T, w1, w2, w3, tm=tm)   # (1, B)
    return out.reshape(B, 1)


def ffnn_reference(x, w1, w2, w3):
    h1 = jnp.tanh(x @ w1.T)
    h2 = jnp.tanh(h1 @ w2.T)
    return h2 @ w3.T


if __name__ == "__main__":
    key = jax.random.PRNGKey(0)
    kx, k1, k2, k3 = jax.random.split(key, 4)

    # Deterministic synthetic parameters (PyTorch Linear weight shapes: [out, in]).
    w1 = jax.random.normal(k1, (32, 2), dtype=jnp.float32) * 0.5
    w2 = jax.random.normal(k2, (16, 32), dtype=jnp.float32) * 0.2
    w3 = jax.random.normal(k3, (1, 16), dtype=jnp.float32) * 0.3

    # Small demo batch (single partial block, masked tail).
    B = 8
    x = jax.random.normal(kx, (B, 2), dtype=jnp.float32)
    out = jax.block_until_ready(ffnn_forward(x, w1, w2, w3))
    ref = ffnn_reference(x, w1, w2, w3)
    assert out.shape == (B, 1), out.shape
    assert jnp.allclose(out, ref, atol=1e-5, rtol=1e-5), (out, ref)

    # Larger non-multiple batch: multi-step grid (>= 2 steps for v7x) with a
    # masked partial last block, no padding anywhere.
    B2 = 3000
    x2 = jax.random.normal(kx, (B2, 2), dtype=jnp.float32)
    out2 = jax.block_until_ready(ffnn_forward(x2, w1, w2, w3))
    ref2 = ffnn_reference(x2, w1, w2, w3)
    assert out2.shape == (B2, 1), out2.shape
    assert jnp.allclose(out2, ref2, atol=1e-5, rtol=1e-5)

    # Channels-first fast path (no wrapper transpose at all).
    out3 = jax.block_until_ready(ffnn_forward_cb(x2.T, w1, w2, w3))
    assert out3.shape == (1, B2)
    assert jnp.allclose(out3.reshape(B2, 1), ref2, atol=1e-5, rtol=1e-5)

    print("KERNEL_OK")
</pallas_src>

<mosaic_0001>
module attributes {stable_mosaic.version = 11 : i64} {
  func.func @ffnn_kernel(%arg0: i32, %arg1: memref<2x128xf32, #tpu.memory_space<vmem>>, %arg2: memref<32x2xf32, #tpu.memory_space<vmem>>, %arg3: memref<16x32xf32, #tpu.memory_space<vmem>>, %arg4: memref<16x1xf32, #tpu.memory_space<vmem>>, %arg5: memref<1x128xf32, #tpu.memory_space<vmem>>) attributes {dimension_semantics = [#tpu.dimension_semantics<parallel>], iteration_bounds = array<i64: 1>, scalar_prefetch = 0 : i64, scratch_operands = 0 : i64, tpu.core_type = #tpu.core_type<tc>, window_params = [{transform_indices = @transform_0, window_bounds = array<i64: 2, 128>}, {pipeline_mode = #tpu.pipeline_mode<synchronous>, transform_indices = @transform_1, window_bounds = array<i64: 32, 2>}, {pipeline_mode = #tpu.pipeline_mode<synchronous>, transform_indices = @transform_2, window_bounds = array<i64: 16, 32>}, {pipeline_mode = #tpu.pipeline_mode<synchronous>, transform_indices = @transform_3, window_bounds = array<i64: 16, 1>}, {transform_indices = @transform_4, window_bounds = array<i64: 1, 128>}]} {
    %c0 = arith.constant 0 : index
    %c0_0 = arith.constant 0 : index
    %0 = vector.load %arg1[%c0, %c0_0] : memref<2x128xf32, #tpu.memory_space<vmem>>, vector<2x128xf32>
    %c0_1 = arith.constant 0 : index
    %c0_2 = arith.constant 0 : index
    %1 = vector.load %arg2[%c0_1, %c0_2] : memref<32x2xf32, #tpu.memory_space<vmem>>, vector<32x2xf32>
    %2 = vector.extract_strided_slice %1 {offsets = [0, 0], sizes = [32, 1], strides = [1, 1]} : vector<32x2xf32> to vector<32x1xf32>
    %3 = vector.extract_strided_slice %0 {offsets = [0, 0], sizes = [1, 128], strides = [1, 1]} : vector<2x128xf32> to vector<1x128xf32>
    %4 = vector.broadcast %2 : vector<32x1xf32> to vector<32x128xf32>
    %5 = vector.broadcast %3 : vector<1x128xf32> to vector<32x128xf32>
    %6 = arith.mulf %4, %5 : vector<32x128xf32>
    %7 = vector.extract_strided_slice %1 {offsets = [0, 1], sizes = [32, 1], strides = [1, 1]} : vector<32x2xf32> to vector<32x1xf32>
    %8 = vector.extract_strided_slice %0 {offsets = [1, 0], sizes = [1, 128], strides = [1, 1]} : vector<2x128xf32> to vector<1x128xf32>
    %9 = vector.broadcast %7 : vector<32x1xf32> to vector<32x128xf32>
    %10 = vector.broadcast %8 : vector<1x128xf32> to vector<32x128xf32>
    %11 = arith.mulf %9, %10 : vector<32x128xf32>
    %12 = arith.addf %6, %11 : vector<32x128xf32>
    %13 = math.tanh %12 : vector<32x128xf32>
    %c0_3 = arith.constant 0 : index
    %c0_4 = arith.constant 0 : index
    %14 = vector.load %arg3[%c0_3, %c0_4] : memref<16x32xf32, #tpu.memory_space<vmem>>, vector<16x32xf32>
    %cst = arith.constant dense<0.000000e+00> : vector<16x128xf32>
    %15 = tpu.matmul %14, %13, %cst {dimension_numbers = #tpu.dot_dimension_numbers<[1], [0], [0], [1], [0, 0, 1, 1], [], []>} : vector<16x32xf32>, vector<32x128xf32>, vector<16x128xf32> -> vector<16x128xf32>
    %16 = math.tanh %15 : vector<16x128xf32>
    %c0_5 = arith.constant 0 : index
    %c0_6 = arith.constant 0 : index
    %17 = vector.load %arg4[%c0_5, %c0_6] : memref<16x1xf32, #tpu.memory_space<vmem>>, vector<16x1xf32>
    %18 = vector.broadcast %17 : vector<16x1xf32> to vector<16x128xf32>
    %19 = arith.mulf %18, %16 : vector<16x128xf32>
    %cst_7 = arith.constant dense<0.000000e+00> : vector<128xf32>
    %20 = vector.multi_reduction <add>, %19, %cst_7 [0] : vector<16x128xf32> to vector<128xf32>
    %21 = vector.shape_cast %20 : vector<128xf32> to vector<1x128xf32>
    %c0_8 = arith.constant 0 : index
    %c0_9 = arith.constant 0 : index
    %22 = vector.load %arg5[%c0_8, %c0_9] : memref<1x128xf32, #tpu.memory_space<vmem>>, vector<1x128xf32>
    tpu.vector_store %arg5[%c0_8, %c0_9], %21 {strides = array<i32>} : memref<1x128xf32, #tpu.memory_space<vmem>>, vector<1x128xf32>,
    return
  }
  func.func @transform_0(%arg0: i32) -> (i32, i32) {
    %c0_i32 = arith.constant 0 : i32
    %c0_i32_0 = arith.constant 0 : i32
    return %c0_i32, %arg0 : i32, i32
  }
  func.func @transform_1(%arg0: i32) -> (i32, i32) {
    %c0_i32 = arith.constant 0 : i32
    %c0_i32_0 = arith.constant 0 : i32
    %c0_i32_1 = arith.constant 0 : i32
    return %c0_i32, %c0_i32_0 : i32, i32
  }
  func.func @transform_2(%arg0: i32) -> (i32, i32) {
    %c0_i32 = arith.constant 0 : i32
    %c0_i32_0 = arith.constant 0 : i32
    %c0_i32_1 = arith.constant 0 : i32
    return %c0_i32, %c0_i32_0 : i32, i32
  }
  func.func @transform_3(%arg0: i32) -> (i32, i32) {
    %c0_i32 = arith.constant 0 : i32
    %c0_i32_0 = arith.constant 0 : i32
    %c0_i32_1 = arith.constant 0 : i32
    return %c0_i32, %c0_i32_0 : i32, i32
  }
  func.func @transform_4(%arg0: i32) -> (i32, i32) {
    %c0_i32 = arith.constant 0 : i32
    %c0_i32_0 = arith.constant 0 : i32
    return %c0_i32, %arg0 : i32, i32
  }
}

</mosaic_0001>

<llo_original>
// kernel: tpu_custom_call.1
$region0: #{tpu_custom_call.1}
  #allocation0 [shape = 'u32[]', space=smem, size = 0x4, offset = 0x4, fixed_abs, tag = 'smem constant byte address 0x4 - core index']
  #allocation1 [shape = 'u32[72,128]{1,0:T(1,128)}', space=vmem, size = 0x9000, scoped, tag = 'internal scratch']
  %s0 = inlined_call_operand.vmem [shape: f32[2,8], index: 0, kind: input, shape index: {}]
  %s1 = inlined_call_operand.vmem [shape: f32[32,2], index: 1, kind: input, shape index: {}]
  %s2 = inlined_call_operand.vmem [shape: f32[16,32], index: 2, kind: input, shape index: {}]
  %s3 = inlined_call_operand.vmem [shape: f32[16,1], index: 3, kind: input, shape index: {}]
  %s4 = inlined_call_operand.hbm [shape: f32[1,8], index: 4, kind: output, shape index: {}]
  %s5 = sld [smem:[#allocation0]]
  $region26: #{tpu_custom_call.1} parent=0
    _
  %s7 = ssub.s32 1, %s5
  %s8 = scalar_select 0, %s7, %s5
  $region1: #{tpu_custom_call.1} parent=0
    #allocation2 [shape = 'u8[512]{0}', space=vmem, size = 0x400, scoped, tag = 'output window, operand 0, single buffered']
    #allocation3 [shape = 's32[1]{0}', space=sflag, size = 0x4, scoped, tag = 'scoped memory for tpu_custom_call.1']
    %9 = vsyncpa [#allocation3], 0
    // Predicated region
    $region2: #{tpu_custom_call.1} parent=1 // pred_check
      _
    $region3: #{tpu_custom_call.1} parent=1 // pred_check_branch
      %11 = sbr.rel (0) target = $region5
    $region4: #{tpu_custom_call.1} parent=1 // pred_region
      _
    $region5: #{tpu_custom_call.1} parent=1 // pred_fallthru
      _
    // Predicated region
    $region6: #{tpu_custom_call.1} parent=1 // pred_check
      _
    $region7: #{tpu_custom_call.1} parent=1 // pred_check_branch
      %13 = sbr.rel (0) target = $region9
    $region8: #{tpu_custom_call.1} parent=1 // pred_region
      _
    $region9: #{tpu_custom_call.1} parent=1 // pred_fallthru
      _
    // Predicated region
    $region10: #{tpu_custom_call.1} parent=1 // pred_check
      _
    $region11: #{tpu_custom_call.1} parent=1 // pred_check_branch
      %15 = sbr.rel (0) target = $region13
    $region12: #{tpu_custom_call.1} parent=1 // pred_region
      _
    $region13: #{tpu_custom_call.1} parent=1 // pred_fallthru
      _
    // Predicated region
    $region14: #{tpu_custom_call.1} parent=1 // pred_check
      _
    $region15: #{tpu_custom_call.1} parent=1 // pred_check_branch
      %17 = sbr.rel (0) target = $region17
    $region16: #{tpu_custom_call.1} parent=1 // pred_region
      _
    $region17: #{tpu_custom_call.1} parent=1 // pred_fallthru
      _
    %v18 = vld [vmem:[%s0] sm:$0x3]
    %v19 = vld [vmem:[%s1] sm:$0xff]
    %v20 = vld [vmem:[%s1 + $0x8] sm:$0xff]
    %v21 = vld [vmem:[%s1 + $0x10] sm:$0xff]
    %v22 = vld [vmem:[%s1 + $0x18] sm:$0xff]
    %24 = vset.pattern.permute.xlu0 0
    %25 = vperm.xlu0 %24, %v19
    %v26 = vpop.permute.xlu0 %25
    %29 = vset.pattern.permute.xlu0 0
    %30 = vperm.xlu0 %29, %v20
    %v31 = vpop.permute.xlu0 %30
    %34 = vset.pattern.permute.xlu0 0
    %35 = vperm.xlu0 %34, %v21
    %v36 = vpop.permute.xlu0 %35
    %39 = vset.pattern.permute.xlu0 0
    %40 = vperm.xlu0 %39, %v22
    %v41 = vpop.permute.xlu0 %40
    %v43 = vperm.slane %v18, 0
    %v44 = vmul.f32 %v26, %v43
    %v45 = vmul.f32 %v31, %v43
    %v46 = vmul.f32 %v36, %v43
    %v47 = vmul.f32 %v41, %v43
    %48 = vset.pattern.permute.xlu0 1
    %49 = vperm.xlu0 %48, %v19
    %v50 = vpop.permute.xlu0 %49
    %52 = vset.pattern.permute.xlu0 1
    %53 = vperm.xlu0 %52, %v20
    %v54 = vpop.permute.xlu0 %53
    %56 = vset.pattern.permute.xlu0 1
    %57 = vperm.xlu0 %56, %v21
    %v58 = vpop.permute.xlu0 %57
    %60 = vset.pattern.permute.xlu0 1
    %61 = vperm.xlu0 %60, %v22
    %v62 = vpop.permute.xlu0 %61
    %v64 = vperm.slane %v18, 1
    %v65 = vmul.f32 %v50, %v64
    %v66 = vmul.f32 %v54, %v64
    %v67 = vmul.f32 %v58, %v64
    %v68 = vmul.f32 %v62, %v64
    %v69 = vadd.f32 %v44, %v65
    %v70 = vadd.f32 %v45, %v66
    %v71 = vadd.f32 %v46, %v67
    %v72 = vadd.f32 %v47, %v68
    %v73 = vtanh.pop %v69
    %v74 = vtanh.pop %v70
    %v75 = vtanh.pop %v71
    %v76 = vtanh.pop %v72
    %v77 = vld [vmem:[%s2] sm:$0xff]
    %v78 = vld [vmem:[%s2 + $0x8] sm:$0xff]
    %vm79 = vcmask 261120
    %v81 = vsel %vm79, %v77, 0
    %v84 = vsel %vm79, %v78, 0
    %86 = vmatpush.msra.mxu0 0.0
    %87 = vmatpush.msra.mxu0 0.0
    %88 = vmatpush.msra.mxu0 0.0
    %89 = vmatpush.msra.mxu0 0.0
    %90 = vmatpush.msra.mxu0 0.0
    %91 = vmatpush.msra.mxu0 0.0
    %92 = vmatpush.msra.mxu0 0.0
    %93 = vmatpush.msra.mxu0 0.0
    %94 = vmatpush.msra.mxu0 0.0
    %95 = vmatpush.msra.mxu0 0.0
    %96 = vmatpush.msra.mxu0 0.0
    %97 = vmatpush.msra.mxu0 0.0
    %98 = vmatpush.msra.mxu0 %v76
    %99 = vmatpush.msra.mxu0 %v75
    %100 = vmatpush.msra.mxu0 %v74
    %101 = vmatpush.msra.mxu0 %v73
    %102 = vmatmul.f32.gmra.mxu0 %v81
    %v103 = vpop.f32.mrf.mxu0
    %v104 = vadd.f32 0.0, %v103
    %105 = vmatmul.f32.gmra.mxu0 %v84
    %v106 = vpop.f32.mrf.mxu0
    %v107 = vadd.f32 0.0, %v106
    %108 = vdwg.mxu0
    %v109 = vtanh.pop %v104
    %v110 = vtanh.pop %v107
    %v111 = vld [vmem:[%s3] sm:$0xff]
    %v112 = vld [vmem:[%s3 + $0x8] sm:$0xff]
    %114 = vset.pattern.permute.xlu0 0
    %115 = vperm.xlu0 %114, %v111
    %v116 = vpop.permute.xlu0 %115
    %119 = vset.pattern.permute.xlu0 0
    %120 = vperm.xlu0 %119, %v112
    %v121 = vpop.permute.xlu0 %120
    %v123 = vmul.f32 %v116, %v109
    %v124 = vmul.f32 %v121, %v110
    %v125 = vadd.f32 %v123, %v124
    %v126 = vrot.slane %v125, 4
    %v127 = vadd.f32 %v125, %v126
    %v128 = vrot.slane %v127, 2
    %v129 = vadd.f32 %v127, %v128
    %v130 = vrot.slane %v129, 1
    %v131 = vadd.f32 %v129, %v130
    %132 = vst [vmem:[#allocation2] sm:$0x1] %v131
    // Predicated region
    $region18: #{tpu_custom_call.1} parent=1 // pred_check
      _
    $region19: #{tpu_custom_call.1} parent=1 // pred_check_branch
      %134 = sbr.rel (0) target = $region21
    $region20: #{tpu_custom_call.1} parent=1 // pred_region
      %136 = vsyncadd [#allocation3], 0
      %s138 = sshll.u32 [#allocation2], 4
      %s139 = int_to_ptr.vmem [resolvable:$true] %s138
      %s140 = sshll.u32 %s4, 4
      %s141 = int_to_ptr.hbm [resolvable:$true] %s140
      %143 = dma.vmem_to_hbm [thread:$0]  %s139, 16, %s141, [#allocation3]
    $region21: #{tpu_custom_call.1} parent=1 // pred_fallthru
      _
    // Predicated region
    $region22: #{tpu_custom_call.1} parent=1 // pred_check
      _
    $region23: #{tpu_custom_call.1} parent=1 // pred_check_branch
      %145 = sbr.rel (0) target = $region25
    $region24: #{tpu_custom_call.1} parent=1 // pred_region
      %147 = dma.done [#allocation3], 16
    $region25: #{tpu_custom_call.1} parent=1 // pred_fallthru
      _
    %148 = vsyncpa [#allocation3], 1

</llo_original>
